<compile_context>
chip_gen: v7x
topology: tpu7x:2x2x1
jax: 0.10.0
libtpu: 0.0.40
codegen_flags: <defaults>
</compile_context>

<pallas_src>
import functools
import math

import jax
import jax.numpy as jnp
from jax.experimental import pallas as pl
from jax.experimental.pallas import tpu as pltpu


def _round_up(v, m):
    return ((v + m - 1) // m) * m


def _mlp_kernel(x_ref, w1_ref, b1_ref, w2_ref, b2_ref, w3_ref, b3_ref, o_ref):
    slope = jnp.float32(0.01)  # PyTorch LeakyReLU default negative_slope

    x = x_ref[...]  # bf16 (TM, in)

    # Layer 1: bf16 matmul, f32 accumulate, f32 elementwise.
    h1 = jnp.dot(x, w1_ref[...], preferred_element_type=jnp.float32) + b1_ref[...]
    h1 = jnp.where(h1 > 0, h1, slope * h1)

    # Layer 2
    h2 = jnp.dot(h1.astype(jnp.bfloat16), w2_ref[...],
                 preferred_element_type=jnp.float32) + b2_ref[...]
    h2 = jnp.where(h2 > 0, h2, slope * h2)

    # Layer 3 (output feature dim padded to a multiple of 128 lanes)
    logits = jnp.dot(h2.astype(jnp.bfloat16), w3_ref[...],
                     preferred_element_type=jnp.float32) + b3_ref[...]

    # sigmoid = 1 / (1 + exp(-x)); exp + approx reciprocal both hit the EUP.
    denom = 1.0 + jnp.exp(-logits)
    o_ref[...] = pl.reciprocal(denom, approx=True).astype(o_ref.dtype)


@functools.partial(jax.jit, static_argnames=("block_m",))
def mlp_forward(x, params, *, block_m=512):
    """x: (B, input_size) f32. params: transposed weights (in,out) + (1,out) biases."""
    w1, b1 = params["w1"], params["b1"]
    w2, b2 = params["w2"], params["b2"]
    w3, b3 = params["w3"], params["b3"]

    B, in_size = x.shape
    H = w1.shape[1]
    out_size = w3.shape[1]

    # --- pad the output feature dim to a multiple of 128 (unmasked lane-dense
    #     stores, full MXU columns on the last matmul)
    n_pad = _round_up(out_size, 128)
    if n_pad != out_size:
        w3 = jnp.pad(w3, ((0, 0), (0, n_pad - out_size)))
        b3 = jnp.pad(b3, ((0, 0), (0, n_pad - out_size)))

    # --- batch tiling: TM multiple of 8, pad B up to a multiple of TM
    tm = min(block_m, _round_up(B, 8))
    tm = _round_up(tm, 8)
    Bp = _round_up(B, tm)
    if Bp != B:
        x = jnp.pad(x, ((0, Bp - B), (0, 0)))

    # --- bf16 matmul operands (halved HBM traffic); biases stay f32
    xb = x.astype(jnp.bfloat16)
    w1b = w1.astype(jnp.bfloat16)
    w2b = w2.astype(jnp.bfloat16)
    w3b = w3.astype(jnp.bfloat16)
    b1f = b1.astype(jnp.float32)
    b2f = b2.astype(jnp.float32)
    b3f = b3.astype(jnp.float32)

    grid = (Bp // tm,)

    flops = 2 * Bp * (in_size * H + H * H + H * n_pad)
    transcendentals = 2 * Bp * n_pad  # exp + reciprocal
    bytes_accessed = (Bp * in_size * 2                          # x (bf16)
                      + (in_size * H + H * H + H * n_pad) * 2   # weights (bf16)
                      + (2 * H + n_pad) * 4                     # biases (f32)
                      + Bp * n_pad * 4)                         # output (f32)

    out = pl.pallas_call(
        _mlp_kernel,
        out_shape=jax.ShapeDtypeStruct((Bp, n_pad), jnp.float32),
        grid=grid,
        in_specs=[
            pl.BlockSpec((tm, in_size), lambda i: (i, 0)),   # x: streamed per batch tile
            pl.BlockSpec((in_size, H), lambda i: (0, 0)),    # w1: VMEM-resident
            pl.BlockSpec((1, H), lambda i: (0, 0)),          # b1
            pl.BlockSpec((H, H), lambda i: (0, 0)),          # w2
            pl.BlockSpec((1, H), lambda i: (0, 0)),          # b2
            pl.BlockSpec((H, n_pad), lambda i: (0, 0)),      # w3 (padded)
            pl.BlockSpec((1, n_pad), lambda i: (0, 0)),      # b3 (padded)
        ],
        out_specs=pl.BlockSpec((tm, n_pad), lambda i: (i, 0)),
        compiler_params=pltpu.CompilerParams(
            dimension_semantics=("parallel",),               # megacore sharding on v7x
        ),
        cost_estimate=pl.CostEstimate(
            flops=flops,
            transcendentals=transcendentals,
            bytes_accessed=bytes_accessed,
        ),
    )(xb, w1b, b1f, w2b, b2f, w3b, b3f)

    return out[:B, :out_size]


def _xavier_uniform(key, fan_in, fan_out, gain=1.0):
    # Matches torch.nn.init.xavier_uniform_ (gain=1): U(-a, a), a = gain*sqrt(6/(fan_in+fan_out)).
    # PyTorch weight is (out, in); sample that shape then transpose to (in, out).
    a = gain * math.sqrt(6.0 / (fan_in + fan_out))
    w = jax.random.uniform(key, (fan_out, fan_in), jnp.float32, minval=-a, maxval=a)
    return w.T


def init_mlp_params(key, input_size, output_size, hidden_size=128):
    k1, k2, k3 = jax.random.split(key, 3)
    return {
        "w1": _xavier_uniform(k1, input_size, hidden_size),
        "b1": jnp.zeros((1, hidden_size), jnp.float32),
        "w2": _xavier_uniform(k2, hidden_size, hidden_size),
        "b2": jnp.zeros((1, hidden_size), jnp.float32),
        "w3": _xavier_uniform(k3, hidden_size, output_size),
        "b3": jnp.zeros((1, output_size), jnp.float32),
    }


def mlp_reference(x, p):
    # Pure-JAX f32 reference of the PyTorch forward.
    lrelu = lambda v: jnp.where(v > 0, v, 0.01 * v)
    h1 = lrelu(x @ p["w1"] + p["b1"])
    h2 = lrelu(h1 @ p["w2"] + p["b2"])
    return jax.nn.sigmoid(h2 @ p["w3"] + p["b3"])


if __name__ == "__main__":
    key = jax.random.PRNGKey(0)
    kx, kp = jax.random.split(key)

    batch, input_size, output_size, hidden_size = 20, 32, 16, 128
    x = jax.random.normal(kx, (batch, input_size), jnp.float32)
    params = init_mlp_params(kp, input_size, output_size, hidden_size)

    ref = mlp_reference(x, params)

    # Small block_m exercises the batch grid (grid=(3,)) and the batch-padding path.
    out_small = jax.block_until_ready(mlp_forward(x, params, block_m=8))
    # Default block_m exercises the single-tile fast path.
    out_big = jax.block_until_ready(mlp_forward(x, params))

    assert out_small.shape == (batch, output_size)
    assert out_big.shape == (batch, output_size)
    # bf16 matmuls + approx reciprocal => loosened tolerance vs the f32 reference.
    assert jnp.allclose(out_small, ref, atol=2e-2, rtol=2e-2), "mismatch (tiled) vs reference"
    assert jnp.allclose(out_big, ref, atol=2e-2, rtol=2e-2), "mismatch (single-tile) vs reference"

    print("KERNEL_OK")
</pallas_src>

<mosaic_0001>
module attributes {stable_mosaic.version = 11 : i64} {
  func.func @_mlp_kernel(%arg0: i32, %arg1: memref<8x32xbf16, #tpu.memory_space<vmem>>, %arg2: memref<32x128xbf16, #tpu.memory_space<vmem>>, %arg3: memref<1x128xf32, #tpu.memory_space<vmem>>, %arg4: memref<128x128xbf16, #tpu.memory_space<vmem>>, %arg5: memref<1x128xf32, #tpu.memory_space<vmem>>, %arg6: memref<128x128xbf16, #tpu.memory_space<vmem>>, %arg7: memref<1x128xf32, #tpu.memory_space<vmem>>, %arg8: memref<8x128xf32, #tpu.memory_space<vmem>>) attributes {dimension_semantics = [#tpu.dimension_semantics<parallel>], iteration_bounds = array<i64: 3>, scalar_prefetch = 0 : i64, scratch_operands = 0 : i64, tpu.core_type = #tpu.core_type<tc>, window_params = [{transform_indices = @transform_0, window_bounds = array<i64: 8, 32>}, {pipeline_mode = #tpu.pipeline_mode<synchronous>, transform_indices = @transform_1, window_bounds = array<i64: 32, 128>}, {pipeline_mode = #tpu.pipeline_mode<synchronous>, transform_indices = @transform_2, window_bounds = array<i64: 1, 128>}, {pipeline_mode = #tpu.pipeline_mode<synchronous>, transform_indices = @transform_3, window_bounds = array<i64: 128, 128>}, {pipeline_mode = #tpu.pipeline_mode<synchronous>, transform_indices = @transform_4, window_bounds = array<i64: 1, 128>}, {pipeline_mode = #tpu.pipeline_mode<synchronous>, transform_indices = @transform_5, window_bounds = array<i64: 128, 128>}, {pipeline_mode = #tpu.pipeline_mode<synchronous>, transform_indices = @transform_6, window_bounds = array<i64: 1, 128>}, {transform_indices = @transform_7, window_bounds = array<i64: 8, 128>}]} {
    %c0 = arith.constant 0 : index
    %c0_0 = arith.constant 0 : index
    %0 = vector.load %arg1[%c0, %c0_0] : memref<8x32xbf16, #tpu.memory_space<vmem>>, vector<8x32xbf16>
    %c0_1 = arith.constant 0 : index
    %c0_2 = arith.constant 0 : index
    %1 = vector.load %arg2[%c0_1, %c0_2] : memref<32x128xbf16, #tpu.memory_space<vmem>>, vector<32x128xbf16>
    %cst = arith.constant dense<0.000000e+00> : vector<8x128xf32>
    %2 = tpu.matmul %0, %1, %cst {dimension_numbers = #tpu.dot_dimension_numbers<[1], [0], [0], [1], [0, 0, 1, 1], [], []>} : vector<8x32xbf16>, vector<32x128xbf16>, vector<8x128xf32> -> vector<8x128xf32>
    %c0_3 = arith.constant 0 : index
    %c0_4 = arith.constant 0 : index
    %3 = vector.load %arg3[%c0_3, %c0_4] : memref<1x128xf32, #tpu.memory_space<vmem>>, vector<1x128xf32>
    %4 = vector.broadcast %3 : vector<1x128xf32> to vector<8x128xf32>
    %5 = arith.addf %2, %4 : vector<8x128xf32>
    %cst_5 = arith.constant 0.000000e+00 : f32
    %6 = vector.broadcast %cst_5 : f32 to vector<8x128xf32>
    %7 = arith.cmpf ogt, %5, %6 : vector<8x128xf32>
    %cst_6 = arith.constant 0.00999999977 : f32
    %8 = vector.broadcast %cst_6 : f32 to vector<8x128xf32>
    %9 = arith.mulf %8, %5 : vector<8x128xf32>
    %10 = arith.select %7, %5, %9 : vector<8x128xi1>, vector<8x128xf32>
    %11 = arith.truncf %10 : vector<8x128xf32> to vector<8x128xbf16>
    %c0_7 = arith.constant 0 : index
    %c0_8 = arith.constant 0 : index
    %12 = vector.load %arg4[%c0_7, %c0_8] : memref<128x128xbf16, #tpu.memory_space<vmem>>, vector<128x128xbf16>
    %cst_9 = arith.constant dense<0.000000e+00> : vector<8x128xf32>
    %13 = tpu.matmul %11, %12, %cst_9 {dimension_numbers = #tpu.dot_dimension_numbers<[1], [0], [0], [1], [0, 0, 1, 1], [], []>} : vector<8x128xbf16>, vector<128x128xbf16>, vector<8x128xf32> -> vector<8x128xf32>
    %c0_10 = arith.constant 0 : index
    %c0_11 = arith.constant 0 : index
    %14 = vector.load %arg5[%c0_10, %c0_11] : memref<1x128xf32, #tpu.memory_space<vmem>>, vector<1x128xf32>
    %15 = vector.broadcast %14 : vector<1x128xf32> to vector<8x128xf32>
    %16 = arith.addf %13, %15 : vector<8x128xf32>
    %cst_12 = arith.constant 0.000000e+00 : f32
    %17 = vector.broadcast %cst_12 : f32 to vector<8x128xf32>
    %18 = arith.cmpf ogt, %16, %17 : vector<8x128xf32>
    %cst_13 = arith.constant 0.00999999977 : f32
    %19 = vector.broadcast %cst_13 : f32 to vector<8x128xf32>
    %20 = arith.mulf %19, %16 : vector<8x128xf32>
    %21 = arith.select %18, %16, %20 : vector<8x128xi1>, vector<8x128xf32>
    %22 = arith.truncf %21 : vector<8x128xf32> to vector<8x128xbf16>
    %c0_14 = arith.constant 0 : index
    %c0_15 = arith.constant 0 : index
    %23 = vector.load %arg6[%c0_14, %c0_15] : memref<128x128xbf16, #tpu.memory_space<vmem>>, vector<128x128xbf16>
    %cst_16 = arith.constant dense<0.000000e+00> : vector<8x128xf32>
    %24 = tpu.matmul %22, %23, %cst_16 {dimension_numbers = #tpu.dot_dimension_numbers<[1], [0], [0], [1], [0, 0, 1, 1], [], []>} : vector<8x128xbf16>, vector<128x128xbf16>, vector<8x128xf32> -> vector<8x128xf32>
    %c0_17 = arith.constant 0 : index
    %c0_18 = arith.constant 0 : index
    %25 = vector.load %arg7[%c0_17, %c0_18] : memref<1x128xf32, #tpu.memory_space<vmem>>, vector<1x128xf32>
    %26 = vector.broadcast %25 : vector<1x128xf32> to vector<8x128xf32>
    %27 = arith.addf %24, %26 : vector<8x128xf32>
    %cst_19 = arith.constant 0.000000e+00 : f32
    %28 = vector.broadcast %cst_19 : f32 to vector<8x128xf32>
    %29 = arith.subf %28, %27 : vector<8x128xf32>
    %30 = math.exp %29 : vector<8x128xf32>
    %cst_20 = arith.constant 1.000000e+00 : f32
    %31 = vector.broadcast %cst_20 : f32 to vector<8x128xf32>
    %32 = arith.addf %31, %30 : vector<8x128xf32>
    %33 = tpu.reciprocal %32 {approx = true} : vector<8x128xf32> -> vector<8x128xf32>
    %c0_21 = arith.constant 0 : index
    %c0_22 = arith.constant 0 : index
    %34 = vector.load %arg8[%c0_21, %c0_22] : memref<8x128xf32, #tpu.memory_space<vmem>>, vector<8x128xf32>
    tpu.vector_store %arg8[%c0_21, %c0_22], %33 {strides = array<i32>} : memref<8x128xf32, #tpu.memory_space<vmem>>, vector<8x128xf32>,
    return
  }
  func.func @transform_0(%arg0: i32) -> (i32, i32) {
    %c0_i32 = arith.constant 0 : i32
    %c0_i32_0 = arith.constant 0 : i32
    return %arg0, %c0_i32 : i32, i32
  }
  func.func @transform_1(%arg0: i32) -> (i32, i32) {
    %c0_i32 = arith.constant 0 : i32
    %c0_i32_0 = arith.constant 0 : i32
    %c0_i32_1 = arith.constant 0 : i32
    return %c0_i32, %c0_i32_0 : i32, i32
  }
  func.func @transform_2(%arg0: i32) -> (i32, i32) {
    %c0_i32 = arith.constant 0 : i32
    %c0_i32_0 = arith.constant 0 : i32
    %c0_i32_1 = arith.constant 0 : i32
    return %c0_i32, %c0_i32_0 : i32, i32
  }
  func.func @transform_3(%arg0: i32) -> (i32, i32) {
    %c0_i32 = arith.constant 0 : i32
    %c0_i32_0 = arith.constant 0 : i32
    %c0_i32_1 = arith.constant 0 : i32
    return %c0_i32, %c0_i32_0 : i32, i32
  }
  func.func @transform_4(%arg0: i32) -> (i32, i32) {
    %c0_i32 = arith.constant 0 : i32
    %c0_i32_0 = arith.constant 0 : i32
    %c0_i32_1 = arith.constant 0 : i32
    return %c0_i32, %c0_i32_0 : i32, i32
  }
  func.func @transform_5(%arg0: i32) -> (i32, i32) {
    %c0_i32 = arith.constant 0 : i32
    %c0_i32_0 = arith.constant 0 : i32
    %c0_i32_1 = arith.constant 0 : i32
    return %c0_i32, %c0_i32_0 : i32, i32
  }
  func.func @transform_6(%arg0: i32) -> (i32, i32) {
    %c0_i32 = arith.constant 0 : i32
    %c0_i32_0 = arith.constant 0 : i32
    %c0_i32_1 = arith.constant 0 : i32
    return %c0_i32, %c0_i32_0 : i32, i32
  }
  func.func @transform_7(%arg0: i32) -> (i32, i32) {
    %c0_i32 = arith.constant 0 : i32
    %c0_i32_0 = arith.constant 0 : i32
    return %arg0, %c0_i32 : i32, i32
  }
}

</mosaic_0001>

<llo_original>
// kernel: mlp_forward.1
$region0: #{mlp_forward.1}
  #allocation0 [shape = 'u32[]', space=smem, size = 0x4, offset = 0x4, fixed_abs, tag = 'smem constant byte address 0x4 - core index']
  #allocation1 [shape = 'u32[144,128]{1,0:T(1,128)}', space=vmem, size = 0x12000, scoped, tag = 'internal scratch']
  %s0 = inlined_call_operand.vmem [shape: bf16[24,32], index: 0, kind: input, shape index: {}]
  %s1 = inlined_call_operand.vmem [shape: bf16[32,128], index: 1, kind: input, shape index: {}]
  %s2 = inlined_call_operand.vmem [shape: f32[1,128], index: 2, kind: input, shape index: {}]
  %s3 = inlined_call_operand.vmem [shape: bf16[128,128], index: 3, kind: input, shape index: {}]
  %s4 = inlined_call_operand.vmem [shape: f32[1,128], index: 4, kind: input, shape index: {}]
  %s5 = inlined_call_operand.vmem [shape: bf16[128,128], index: 5, kind: input, shape index: {}]
  %s6 = inlined_call_operand.vmem [shape: f32[1,128], index: 6, kind: input, shape index: {}]
  %s7 = inlined_call_operand.vmem [shape: f32[24,128], index: 7, kind: output, shape index: {}]
  %s8 = sld [smem:[#allocation0]]
  $region61: #{mlp_forward.1} parent=0
    _
  %s10 = ssub.s32 1, %s8
  %s11 = scalar_select 0, %s10, %s8
  loop: start=0, step=1, limit=5
  $region2: #{mlp_forward.1} parent=0 // loop_pre_header
    _
  $region3: #{mlp_forward.1} parent=0 // loop_header
    %s13 = sphi 0, %s17
    %p14 = scmp.ge.s32.totalorder %s13, 5
    %s23 = sphi 0, %s25
    %s26 = sphi 0, %s23
    %s27 = sphi 0, %s26
    %s43 = sphi 0, %s27
    %s47 = sphi 0, %s47
    %s49 = sphi 0, %s47
    %s50 = sphi 0, %s49
    %s64 = sphi 0, %s50
    %s68 = sphi 0, %s68
    %s70 = sphi 0, %s68
    %s71 = sphi 0, %s70
    %s85 = sphi 0, %s71
    %s89 = sphi 0, %s89
    %s91 = sphi 0, %s89
    %s92 = sphi 0, %s91
    %s106 = sphi 0, %s92
    %s110 = sphi 0, %s110
    %s112 = sphi 0, %s110
    %s113 = sphi 0, %s112
    %s127 = sphi 0, %s113
    %s131 = sphi 0, %s131
    %s133 = sphi 0, %s131
    %s134 = sphi 0, %s133
    %s148 = sphi 0, %s134
    %s152 = sphi 0, %s152
    %s154 = sphi 0, %s152
    %s155 = sphi 0, %s154
    %s169 = sphi 0, %s155
    %s175 = sphi 0, %s177
    %s178 = sphi 0, %s175
    %s179 = sphi 0, %s178
    %s195 = sphi 0, %s179
  $region4: #{mlp_forward.1} parent=0 // loop_header_branch
    %16 = sbr.rel (%p14) target = $region8
  $region5: #{mlp_forward.1} parent=0 // loop_body
    %s18 = ssub.s32 %s13, 1
    %s19 = ssub.s32 %s13, 2
    %s20 = sadd.s32 %s13, 1
    %s21 = ssub.s32 %s13, %s20
    %p22 = scmp.eq.s32.totalorder %s21, 0
    %s24 = sadd.s32 %s23, 1
    %s25 = scalar_select %p22, %s23, %s24
    %p28 = pneg %p22
    %p29 = scmp.eq.s32.totalorder %s13, 2
    %p30 = por %p28, %p29
    %p31 = scmp.ne.s32.totalorder %s23, %s26
    %p32 = scmp.eq.s32.totalorder %s13, 0
    %p33 = por %p31, %p32
    %p34 = scmp.ne.s32.totalorder %s23, %s26
    %p35 = scmp.eq.s32.totalorder %s18, 2
    %p36 = por %p34, %p35
    %p37 = scmp.ne.s32.totalorder %s26, %s27
    %p38 = scmp.eq.s32.totalorder %s18, 0
    %p39 = por %p37, %p38
    %p40 = scmp.ne.s32.totalorder %s26, %s27
    %p41 = scmp.eq.s32.totalorder %s19, 2
    %p42 = por %p40, %p41
    %p44 = scmp.ne.s32.totalorder %s27, %s43
    %p45 = scmp.eq.s32.totalorder %s19, 0
    %p46 = por %p44, %p45
    %s48 = sadd.s32 %s47, 1
    %p51 = scmp.eq.s32.totalorder %s13, 2
    %p52 = scmp.ne.s32.totalorder %s47, %s49
    %p53 = scmp.eq.s32.totalorder %s13, 0
    %p54 = por %p52, %p53
    %p55 = scmp.ne.s32.totalorder %s47, %s49
    %p56 = scmp.eq.s32.totalorder %s18, 2
    %p57 = por %p55, %p56
    %p58 = scmp.ne.s32.totalorder %s49, %s50
    %p59 = scmp.eq.s32.totalorder %s18, 0
    %p60 = por %p58, %p59
    %p61 = scmp.ne.s32.totalorder %s49, %s50
    %p62 = scmp.eq.s32.totalorder %s19, 2
    %p63 = por %p61, %p62
    %p65 = scmp.ne.s32.totalorder %s50, %s64
    %p66 = scmp.eq.s32.totalorder %s19, 0
    %p67 = por %p65, %p66
    %s69 = sadd.s32 %s68, 1
    %p72 = scmp.eq.s32.totalorder %s13, 2
    %p73 = scmp.ne.s32.totalorder %s68, %s70
    %p74 = scmp.eq.s32.totalorder %s13, 0
    %p75 = por %p73, %p74
    %p76 = scmp.ne.s32.totalorder %s68, %s70
    %p77 = scmp.eq.s32.totalorder %s18, 2
    %p78 = por %p76, %p77
    %p79 = scmp.ne.s32.totalorder %s70, %s71
    %p80 = scmp.eq.s32.totalorder %s18, 0
    %p81 = por %p79, %p80
    %p82 = scmp.ne.s32.totalorder %s70, %s71
    %p83 = scmp.eq.s32.totalorder %s19, 2
    %p84 = por %p82, %p83
    %p86 = scmp.ne.s32.totalorder %s71, %s85
    %p87 = scmp.eq.s32.totalorder %s19, 0
    %p88 = por %p86, %p87
    %s90 = sadd.s32 %s89, 1
    %p93 = scmp.eq.s32.totalorder %s13, 2
    %p94 = scmp.ne.s32.totalorder %s89, %s91
    %p95 = scmp.eq.s32.totalorder %s13, 0
    %p96 = por %p94, %p95
    %p97 = scmp.ne.s32.totalorder %s89, %s91
    %p98 = scmp.eq.s32.totalorder %s18, 2
    %p99 = por %p97, %p98
    %p100 = scmp.ne.s32.totalorder %s91, %s92
    %p101 = scmp.eq.s32.totalorder %s18, 0
    %p102 = por %p100, %p101
    %p103 = scmp.ne.s32.totalorder %s91, %s92
    %p104 = scmp.eq.s32.totalorder %s19, 2
    %p105 = por %p103, %p104
    %p107 = scmp.ne.s32.totalorder %s92, %s106
    %p108 = scmp.eq.s32.totalorder %s19, 0
    %p109 = por %p107, %p108
    %s111 = sadd.s32 %s110, 1
    %p114 = scmp.eq.s32.totalorder %s13, 2
    %p115 = scmp.ne.s32.totalorder %s110, %s112
    %p116 = scmp.eq.s32.totalorder %s13, 0
    %p117 = por %p115, %p116
    %p118 = scmp.ne.s32.totalorder %s110, %s112
    %p119 = scmp.eq.s32.totalorder %s18, 2
    %p120 = por %p118, %p119
    %p121 = scmp.ne.s32.totalorder %s112, %s113
    %p122 = scmp.eq.s32.totalorder %s18, 0
    %p123 = por %p121, %p122
    %p124 = scmp.ne.s32.totalorder %s112, %s113
    %p125 = scmp.eq.s32.totalorder %s19, 2
    %p126 = por %p124, %p125
    %p128 = scmp.ne.s32.totalorder %s113, %s127
    %p129 = scmp.eq.s32.totalorder %s19, 0
    %p130 = por %p128, %p129
    %s132 = sadd.s32 %s131, 1
    %p135 = scmp.eq.s32.totalorder %s13, 2
    %p136 = scmp.ne.s32.totalorder %s131, %s133
    %p137 = scmp.eq.s32.totalorder %s13, 0
    %p138 = por %p136, %p137
    %p139 = scmp.ne.s32.totalorder %s131, %s133
    %p140 = scmp.eq.s32.totalorder %s18, 2
    %p141 = por %p139, %p140
    %p142 = scmp.ne.s32.totalorder %s133, %s134
    %p143 = scmp.eq.s32.totalorder %s18, 0
    %p144 = por %p142, %p143
    %p145 = scmp.ne.s32.totalorder %s133, %s134
    %p146 = scmp.eq.s32.totalorder %s19, 2
    %p147 = por %p145, %p146
    %p149 = scmp.ne.s32.totalorder %s134, %s148
    %p150 = scmp.eq.s32.totalorder %s19, 0
    %p151 = por %p149, %p150
    %s153 = sadd.s32 %s152, 1
    %p156 = scmp.eq.s32.totalorder %s13, 2
    %p157 = scmp.ne.s32.totalorder %s152, %s154
    %p158 = scmp.eq.s32.totalorder %s13, 0
    %p159 = por %p157, %p158
    %p160 = scmp.ne.s32.totalorder %s152, %s154
    %p161 = scmp.eq.s32.totalorder %s18, 2
    %p162 = por %p160, %p161
    %p163 = scmp.ne.s32.totalorder %s154, %s155
    %p164 = scmp.eq.s32.totalorder %s18, 0
    %p165 = por %p163, %p164
    %p166 = scmp.ne.s32.totalorder %s154, %s155
    %p167 = scmp.eq.s32.totalorder %s19, 2
    %p168 = por %p166, %p167
    %p170 = scmp.ne.s32.totalorder %s155, %s169
    %p171 = scmp.eq.s32.totalorder %s19, 0
    %p172 = por %p170, %p171
    %s173 = ssub.s32 %s13, %s20
    %p174 = scmp.eq.s32.totalorder %s173, 0
    %s176 = sadd.s32 %s175, 1
    %s177 = scalar_select %p174, %s175, %s176
    %p180 = pneg %p174
    %p181 = scmp.eq.s32.totalorder %s13, 2
    %p182 = por %p180, %p181
    %p183 = scmp.ne.s32.totalorder %s175, %s178
    %p184 = scmp.eq.s32.totalorder %s13, 0
    %p185 = por %p183, %p184
    %p186 = scmp.ne.s32.totalorder %s175, %s178
    %p187 = scmp.eq.s32.totalorder %s18, 2
    %p188 = por %p186, %p187
    %p189 = scmp.ne.s32.totalorder %s178, %s179
    %p190 = scmp.eq.s32.totalorder %s18, 0
    %p191 = por %p189, %p190
    %p192 = scmp.ne.s32.totalorder %s178, %s179
    %p193 = scmp.eq.s32.totalorder %s19, 2
    %p194 = por %p192, %p193
    %p196 = scmp.ne.s32.totalorder %s179, %s195
    %p197 = scmp.eq.s32.totalorder %s19, 0
    %p198 = por %p196, %p197
    %p199 = scmp.le.s32.totalorder 1, %s13
    %p200 = scmp.lt.s32.totalorder %s13, 4
    %p201 = pnand %p199, %p200
    %p202 = pneg %p201
    // Predicated region
    $region9: #{mlp_forward.1} parent=5 // pred_check
      _
    $region10: #{mlp_forward.1} parent=5 // pred_check_branch
      %204 = sbr.rel (%p201) target = $region12
    $region11: #{mlp_forward.1} parent=5 // pred_region
      %s205 = ssub.s32 %s13, 1
      // Predicated region
      $region13: #{mlp_forward.1} parent=11 // pred_check
        %p206 = pneg %p60
      $region14: #{mlp_forward.1} parent=11 // pred_check_branch
        %208 = sbr.rel (%p206) target = $region16
      $region15: #{mlp_forward.1} parent=11 // pred_region
        _
      $region16: #{mlp_forward.1} parent=11 // pred_fallthru
        _
      // Predicated region
      $region17: #{mlp_forward.1} parent=11 // pred_check
        %p209 = pneg %p81
      $region18: #{mlp_forward.1} parent=11 // pred_check_branch
        %211 = sbr.rel (%p209) target = $region20
      $region19: #{mlp_forward.1} parent=11 // pred_region
        _
      $region20: #{mlp_forward.1} parent=11 // pred_fallthru
        _
      // Predicated region
      $region21: #{mlp_forward.1} parent=11 // pred_check
        %p212 = pneg %p102
      $region22: #{mlp_forward.1} parent=11 // pred_check_branch
        %214 = sbr.rel (%p212) target = $region24
      $region23: #{mlp_forward.1} parent=11 // pred_region
        _
      $region24: #{mlp_forward.1} parent=11 // pred_fallthru
        _
      // Predicated region
      $region25: #{mlp_forward.1} parent=11 // pred_check
        %p215 = pneg %p123
      $region26: #{mlp_forward.1} parent=11 // pred_check_branch
        %217 = sbr.rel (%p215) target = $region28
      $region27: #{mlp_forward.1} parent=11 // pred_region
        _
      $region28: #{mlp_forward.1} parent=11 // pred_fallthru
        _
      // Predicated region
      $region29: #{mlp_forward.1} parent=11 // pred_check
        %p218 = pneg %p144
      $region30: #{mlp_forward.1} parent=11 // pred_check_branch
        %220 = sbr.rel (%p218) target = $region32
      $region31: #{mlp_forward.1} parent=11 // pred_region
        _
      $region32: #{mlp_forward.1} parent=11 // pred_fallthru
        _
      // Predicated region
      $region33: #{mlp_forward.1} parent=11 // pred_check
        %p221 = pneg %p165
      $region34: #{mlp_forward.1} parent=11 // pred_check_branch
        %223 = sbr.rel (%p221) target = $region36
      $region35: #{mlp_forward.1} parent=11 // pred_region
        _
      $region36: #{mlp_forward.1} parent=11 // pred_fallthru
        _
    $region12: #{mlp_forward.1} parent=5 // pred_fallthru
      _
    %p224 = scmp.lt.s32.totalorder %s13, 3
    // Predicated region
    $region37: #{mlp_forward.1} parent=5 // pred_check
      %p225 = pneg %p224
    $region38: #{mlp_forward.1} parent=5 // pred_check_branch
      %227 = sbr.rel (%p225) target = $region40
    $region39: #{mlp_forward.1} parent=5 // pred_region
      // Predicated region
      $region41: #{mlp_forward.1} parent=39 // pred_check
        %p228 = pneg %p33
      $region42: #{mlp_forward.1} parent=39 // pred_check_branch
        %230 = sbr.rel (%p228) target = $region44
      $region43: #{mlp_forward.1} parent=39 // pred_region
        %p231 = scmp.lt.s32.totalorder %s13, 2
        %s232 = scalar_select %p231, %s13, 2
        %s233 = smul.addr %s232, 4
        %s234 = scalar_lea.vmem %s0, %s233
      $region44: #{mlp_forward.1} parent=39 // pred_fallthru
        _
    $region40: #{mlp_forward.1} parent=5 // pred_fallthru
      _
    %p235 = scmp.le.s32.totalorder 1, %s13
    %p236 = scmp.lt.s32.totalorder %s13, 4
    %p237 = pnand %p235, %p236
    %p238 = pneg %p237
    // Predicated region
    $region45: #{mlp_forward.1} parent=5 // pred_check
      _
    $region46: #{mlp_forward.1} parent=5 // pred_check_branch
      %240 = sbr.rel (%p237) target = $region48
    $region47: #{mlp_forward.1} parent=5 // pred_region
      %s241 = ssub.s32 %s13, 1
      %p242 = scmp.lt.s32.totalorder %s18, 2
      %s243 = scalar_select %p242, %s18, 2
      %s244 = smul.addr %s243, 4
      %s245 = scalar_lea.vmem %s0, %s244
      %p246 = pneg %p39
      %p247 = pneg %p36
      %p248 = pneg %p60
      %p249 = pneg %p57
      %p250 = pneg %p81
      %p251 = pneg %p78
      %p252 = pneg %p102
      %p253 = pneg %p99
      %p254 = pneg %p123
      %p255 = pneg %p120
      %p256 = pneg %p144
      %p257 = pneg %p141
      %p258 = pneg %p165
      %p259 = pneg %p162
      %p260 = pneg %p191
      %p261 = pneg %p188
      %p262 = scmp.lt.s32.totalorder %s18, 2
      %s263 = scalar_select %p262, %s18, 2
      %s264 = smul.addr %s263, 8
      %s265 = scalar_lea.vmem %s7, %s264
      %p266 = scmp.lt.s32.totalorder %s18, 2
      %s267 = scalar_select %p266, %s18, 2
      %s268 = smul.addr %s267, 4
      %s269 = scalar_lea.vmem %s0, %s268
      %p270 = scmp.lt.s32.totalorder %s18, 2
      %s271 = scalar_select %p270, %s18, 2
      %s272 = smul.addr %s271, 8
      %s273 = scalar_lea.vmem %s7, %s272
      %v275 = vld [vmem:[%s269] sm:$0xf]
      %v276 = vld [vmem:[%s1] sm:$0xf]
      %v277 = vld [vmem:[%s1 + $0x4] sm:$0xf]
      %v278 = vld [vmem:[%s1 + $0x8] sm:$0xf]
      %v279 = vld [vmem:[%s1 + $0xc] sm:$0xf]
      %v280 = vld [vmem:[%s2] sm:$0x1]
      %v282 = vlaneseq
      %v283 = vshrl.u32 %v282, 7
      %v284 = vsub.s32 0, %v283
      %v285 = vrot.slane %v280, %v284
      %v291 = vunpack.c.l.b16 %v276
      %v292 = vunpack.c.l.b16 %v277
      %v293 = vunpack.c.l.b16 %v278
      %v294 = vunpack.c.l.b16 %v279
      %v295 = vpack.c.b16 %v292, %v291
      %v296 = vpack.c.b16 %v294, %v293
      %vm299 = vcmask 261120
      %v301 = vsel %vm299, %v275, 0
      %303 = vmatprep.subr.bf16.mxu0 0
      %304 = vmatpush1.bf16.msra.mxu0 %v295
      %305 = vmatprep.subr.bf16.mxu0 0
      %306 = vmatpush1.bf16.msra.mxu0 %v296
      %307 = vmatprep.subr.bf16.mxu0 0
      %308 = vmatpush1.bf16.msra.mxu0 0
      %309 = vmatprep.subr.bf16.mxu0 0
      %310 = vmatpush1.bf16.msra.mxu0 0
      %311 = vmatprep.subr.bf16.mxu0 0
      %312 = vmatpush1.bf16.msra.mxu0 0
      %313 = vmatprep.subr.bf16.mxu0 0
      %314 = vmatpush1.bf16.msra.mxu0 0
      %315 = vmatprep.subr.bf16.mxu0 0
      %316 = vmatpush1.bf16.msra.mxu0 0
      %317 = vmatprep.subr.bf16.mxu0 0
      %318 = vmatpush1.bf16.msra.mxu0 0
      %319 = vmatprep.subr.bf16.mxu0 0
      %320 = vmatpush1.bf16.msra.mxu0 0
      %321 = vmatprep.subr.bf16.mxu0 0
      %322 = vmatpush1.bf16.msra.mxu0 0
      %323 = vmatprep.subr.bf16.mxu0 0
      %324 = vmatpush1.bf16.msra.mxu0 0
      %325 = vmatprep.subr.bf16.mxu0 0
      %326 = vmatpush1.bf16.msra.mxu0 0
      %327 = vmatprep.subr.bf16.mxu0 0
      %328 = vmatpush1.bf16.msra.mxu0 0
      %329 = vmatprep.subr.bf16.mxu0 0
      %330 = vmatpush1.bf16.msra.mxu0 0
      %331 = vmatprep.subr.bf16.mxu0 0
      %332 = vmatpush1.bf16.msra.mxu0 0
      %333 = vmatprep.subr.bf16.mxu0 0
      %334 = vmatpush1.bf16.msra.mxu0 0
      %335 = vmatprep.mubr.bf16.mxu0 0
      %336 = vmatmul.mubr.bf16.gmra.mrb[0].mxu0 %v301
      %v337 = vpop.f32.mrb[0].mxu0
      %v338 = vadd.f32 %v285, %v337
      %v339 = vpop.f32.mrb[0].mxu0
      %v340 = vpop.f32.mrb[0].mxu0
      %v341 = vpop.f32.mrb[0].mxu0
      %342 = vdwg.mxu0
      %vm343 = vcmp.gt.f32.partialorder %v338, 0.0
      %v344 = vmul.f32 %v338, 0.01
      %v345 = vsel %vm343, %v338, %v344
      %v346 = vpack.c.bf16 %v345, %v345
      %v347 = vld [vmem:[%s3] sm:$0xf]
      %v348 = vld [vmem:[%s3 + $0x4] sm:$0xf]
      %v349 = vld [vmem:[%s3 + $0x8] sm:$0xf]
      %v350 = vld [vmem:[%s3 + $0xc] sm:$0xf]
      %v351 = vld [vmem:[%s3 + $0x10] sm:$0xf]
      %v352 = vld [vmem:[%s3 + $0x14] sm:$0xf]
      %v353 = vld [vmem:[%s3 + $0x18] sm:$0xf]
      %v354 = vld [vmem:[%s3 + $0x1c] sm:$0xf]
      %v355 = vld [vmem:[%s3 + $0x20] sm:$0xf]
      %v356 = vld [vmem:[%s3 + $0x24] sm:$0xf]
      %v357 = vld [vmem:[%s3 + $0x28] sm:$0xf]
      %v358 = vld [vmem:[%s3 + $0x2c] sm:$0xf]
      %v359 = vld [vmem:[%s3 + $0x30] sm:$0xf]
      %v360 = vld [vmem:[%s3 + $0x34] sm:$0xf]
      %v361 = vld [vmem:[%s3 + $0x38] sm:$0xf]
      %v362 = vld [vmem:[%s3 + $0x3c] sm:$0xf]
      %v363 = vld [vmem:[%s4] sm:$0x1]
      %v365 = vlaneseq
      %v366 = vshrl.u32 %v365, 7
      %v367 = vsub.s32 0, %v366
      %v368 = vrot.slane %v363, %v367
      %v386 = vunpack.c.l.b16 %v347
      %v387 = vunpack.c.l.b16 %v348
      %v388 = vunpack.c.l.b16 %v349
      %v389 = vunpack.c.l.b16 %v350
      %v390 = vunpack.c.l.b16 %v351
      %v391 = vunpack.c.l.b16 %v352
      %v392 = vunpack.c.l.b16 %v353
      %v393 = vunpack.c.l.b16 %v354
      %v394 = vunpack.c.l.b16 %v355
      %v395 = vunpack.c.l.b16 %v356
      %v396 = vunpack.c.l.b16 %v357
      %v397 = vunpack.c.l.b16 %v358
      %v398 = vunpack.c.l.b16 %v359
      %v399 = vunpack.c.l.b16 %v360
      %v400 = vunpack.c.l.b16 %v361
      %v401 = vunpack.c.l.b16 %v362
      %v402 = vpack.c.b16 %v387, %v386
      %v403 = vpack.c.b16 %v389, %v388
      %v404 = vpack.c.b16 %v391, %v390
      %v405 = vpack.c.b16 %v393, %v392
      %v406 = vpack.c.b16 %v395, %v394
      %v407 = vpack.c.b16 %v397, %v396
      %v408 = vpack.c.b16 %v399, %v398
      %v409 = vpack.c.b16 %v401, %v400
      %418 = vmatprep.subr.bf16.mxu0 0
      %419 = vmatpush1.bf16.msra.mxu0 %v402
      %420 = vmatprep.subr.bf16.mxu0 0
      %421 = vmatpush1.bf16.msra.mxu0 %v403
      %422 = vmatprep.subr.bf16.mxu0 0
      %423 = vmatpush1.bf16.msra.mxu0 %v404
      %424 = vmatprep.subr.bf16.mxu0 0
      %425 = vmatpush1.bf16.msra.mxu0 %v405
      %426 = vmatprep.subr.bf16.mxu0 0
      %427 = vmatpush1.bf16.msra.mxu0 %v406
      %428 = vmatprep.subr.bf16.mxu0 0
      %429 = vmatpush1.bf16.msra.mxu0 %v407
      %430 = vmatprep.subr.bf16.mxu0 0
      %431 = vmatpush1.bf16.msra.mxu0 %v408
      %432 = vmatprep.subr.bf16.mxu0 0
      %433 = vmatpush1.bf16.msra.mxu0 %v409
      %434 = vmatprep.subr.bf16.mxu0 0
      %435 = vmatpush1.bf16.msra.mxu0 0
      %436 = vmatprep.subr.bf16.mxu0 0
      %437 = vmatpush1.bf16.msra.mxu0 0
      %438 = vmatprep.subr.bf16.mxu0 0
      %439 = vmatpush1.bf16.msra.mxu0 0
      %440 = vmatprep.subr.bf16.mxu0 0
      %441 = vmatpush1.bf16.msra.mxu0 0
      %442 = vmatprep.subr.bf16.mxu0 0
      %443 = vmatpush1.bf16.msra.mxu0 0
      %444 = vmatprep.subr.bf16.mxu0 0
      %445 = vmatpush1.bf16.msra.mxu0 0
      %446 = vmatprep.subr.bf16.mxu0 0
      %447 = vmatpush1.bf16.msra.mxu0 0
      %448 = vmatprep.subr.bf16.mxu0 0
      %449 = vmatpush1.bf16.msra.mxu0 0
      %450 = vmatprep.mubr.bf16.mxu0 0
      %451 = vmatmul.mubr.bf16.gmra.mrb[0].mxu0 %v346
      %v452 = vpop.f32.mrb[0].mxu0
      %v453 = vadd.f32 %v368, %v452
      %v454 = vpop.f32.mrb[0].mxu0
      %v455 = vpop.f32.mrb[0].mxu0
      %v456 = vpop.f32.mrb[0].mxu0
      %457 = vdwg.mxu0
      %vm458 = vcmp.gt.f32.partialorder %v453, 0.0
      %v459 = vmul.f32 %v453, 0.01
      %v460 = vsel %vm458, %v453, %v459
      %v461 = vpack.c.bf16 %v460, %v460
      %v462 = vld [vmem:[%s5] sm:$0xf]
      %v463 = vld [vmem:[%s5 + $0x4] sm:$0xf]
      %v464 = vld [vmem:[%s5 + $0x8] sm:$0xf]
      %v465 = vld [vmem:[%s5 + $0xc] sm:$0xf]
      %v466 = vld [vmem:[%s5 + $0x10] sm:$0xf]
      %v467 = vld [vmem:[%s5 + $0x14] sm:$0xf]
      %v468 = vld [vmem:[%s5 + $0x18] sm:$0xf]
      %v469 = vld [vmem:[%s5 + $0x1c] sm:$0xf]
      %v470 = vld [vmem:[%s5 + $0x20] sm:$0xf]
      %v471 = vld [vmem:[%s5 + $0x24] sm:$0xf]
      %v472 = vld [vmem:[%s5 + $0x28] sm:$0xf]
      %v473 = vld [vmem:[%s5 + $0x2c] sm:$0xf]
      %v474 = vld [vmem:[%s5 + $0x30] sm:$0xf]
      %v475 = vld [vmem:[%s5 + $0x34] sm:$0xf]
      %v476 = vld [vmem:[%s5 + $0x38] sm:$0xf]
      %v477 = vld [vmem:[%s5 + $0x3c] sm:$0xf]
      %v478 = vld [vmem:[%s6] sm:$0x1]
      %v480 = vlaneseq
      %v481 = vshrl.u32 %v480, 7
      %v482 = vsub.s32 0, %v481
      %v483 = vrot.slane %v478, %v482
      %v501 = vunpack.c.l.b16 %v462
      %v502 = vunpack.c.l.b16 %v463
      %v503 = vunpack.c.l.b16 %v464
      %v504 = vunpack.c.l.b16 %v465
      %v505 = vunpack.c.l.b16 %v466
      %v506 = vunpack.c.l.b16 %v467
      %v507 = vunpack.c.l.b16 %v468
      %v508 = vunpack.c.l.b16 %v469
      %v509 = vunpack.c.l.b16 %v470
      %v510 = vunpack.c.l.b16 %v471
      %v511 = vunpack.c.l.b16 %v472
      %v512 = vunpack.c.l.b16 %v473
      %v513 = vunpack.c.l.b16 %v474
      %v514 = vunpack.c.l.b16 %v475
      %v515 = vunpack.c.l.b16 %v476
      %v516 = vunpack.c.l.b16 %v477
      %v517 = vpack.c.b16 %v502, %v501
      %v518 = vpack.c.b16 %v504, %v503
      %v519 = vpack.c.b16 %v506, %v505
      %v520 = vpack.c.b16 %v508, %v507
      %v521 = vpack.c.b16 %v510, %v509
      %v522 = vpack.c.b16 %v512, %v511
      %v523 = vpack.c.b16 %v514, %v513
      %v524 = vpack.c.b16 %v516, %v515
      %533 = vmatprep.subr.bf16.mxu0 0
      %534 = vmatpush1.bf16.msra.mxu0 %v517
      %535 = vmatprep.subr.bf16.mxu0 0
      %536 = vmatpush1.bf16.msra.mxu0 %v518
      %537 = vmatprep.subr.bf16.mxu0 0
      %538 = vmatpush1.bf16.msra.mxu0 %v519
      %539 = vmatprep.subr.bf16.mxu0 0
      %540 = vmatpush1.bf16.msra.mxu0 %v520
      %541 = vmatprep.subr.bf16.mxu0 0
      %542 = vmatpush1.bf16.msra.mxu0 %v521
      %543 = vmatprep.subr.bf16.mxu0 0
      %544 = vmatpush1.bf16.msra.mxu0 %v522
      %545 = vmatprep.subr.bf16.mxu0 0
      %546 = vmatpush1.bf16.msra.mxu0 %v523
      %547 = vmatprep.subr.bf16.mxu0 0
      %548 = vmatpush1.bf16.msra.mxu0 %v524
      %549 = vmatprep.subr.bf16.mxu0 0
      %550 = vmatpush1.bf16.msra.mxu0 0
      %551 = vmatprep.subr.bf16.mxu0 0
      %552 = vmatpush1.bf16.msra.mxu0 0
      %553 = vmatprep.subr.bf16.mxu0 0
      %554 = vmatpush1.bf16.msra.mxu0 0
      %555 = vmatprep.subr.bf16.mxu0 0
      %556 = vmatpush1.bf16.msra.mxu0 0
      %557 = vmatprep.subr.bf16.mxu0 0
      %558 = vmatpush1.bf16.msra.mxu0 0
      %559 = vmatprep.subr.bf16.mxu0 0
      %560 = vmatpush1.bf16.msra.mxu0 0
      %561 = vmatprep.subr.bf16.mxu0 0
      %562 = vmatpush1.bf16.msra.mxu0 0
      %563 = vmatprep.subr.bf16.mxu0 0
      %564 = vmatpush1.bf16.msra.mxu0 0
      %565 = vmatprep.mubr.bf16.mxu0 0
      %566 = vmatmul.mubr.bf16.gmra.mrb[0].mxu0 %v461
      %v567 = vpop.f32.mrb[0].mxu0
      %v568 = vadd.f32 %v483, %v567
      %v569 = vpop.f32.mrb[0].mxu0
      %v570 = vpop.f32.mrb[0].mxu0
      %v571 = vpop.f32.mrb[0].mxu0
      %572 = vdwg.mxu0
      %v573 = vsub.f32 0.0, %v568
      %v574 = vmul.f32 %v573, 1.442695
      %v575 = vpow.pop %v574
      %v576 = vadd.f32 %v575, 1.0
      %v577 = vrcp.pop %v576
      %578 = vst [vmem:[%s273] sm:$0xff] %v577
      %p579 = scmp.lt.s32.totalorder %s18, 2
      %s580 = scalar_select %p579, %s18, 2
      %s581 = smul.addr %s580, 8
      %s582 = scalar_lea.vmem %s7, %s581
      // Predicated region
      $region49: #{mlp_forward.1} parent=47 // pred_check
        %p583 = pneg %p188
      $region50: #{mlp_forward.1} parent=47 // pred_check_branch
        %585 = sbr.rel (%p583) target = $region52
      $region51: #{mlp_forward.1} parent=47 // pred_region
        _
      $region52: #{mlp_forward.1} parent=47 // pred_fallthru
        _
    $region48: #{mlp_forward.1} parent=5 // pred_fallthru
      _
    %p586 = scmp.le.s32.totalorder 2, %s13
    // Predicated region
    $region53: #{mlp_forward.1} parent=5 // pred_check
      %p587 = pneg %p586
    $region54: #{mlp_forward.1} parent=5 // pred_check_branch
      %589 = sbr.rel (%p587) target = $region56
    $region55: #{mlp_forward.1} parent=5 // pred_region
      %s590 = ssub.s32 %s13, 2
      // Predicated region
      $region57: #{mlp_forward.1} parent=55 // pred_check
        %p591 = pneg %p194
      $region58: #{mlp_forward.1} parent=55 // pred_check_branch
        %593 = sbr.rel (%p591) target = $region60
      $region59: #{mlp_forward.1} parent=55 // pred_region
        %p594 = scmp.lt.s32.totalorder %s19, 2
        %s595 = scalar_select %p594, %s19, 2
        %s596 = smul.addr %s595, 8
        %s597 = scalar_lea.vmem %s7, %s596
      $region60: #{mlp_forward.1} parent=55 // pred_fallthru
        _
    $region56: #{mlp_forward.1} parent=5 // pred_fallthru
      _
  $region6: #{mlp_forward.1} parent=0 // loop_footer
    %s17 = sadd.s32 1, %s13
  $region7: #{mlp_forward.1} parent=0 // loop_footer_branch
    %12 = sbr.rel target = $region3
  $region8: #{mlp_forward.1} parent=0 // loop_exit
    _

</llo_original>
